<compile_context>
chip_gen: v7x
topology: tpu7x:2x2x1
jax: 0.10.0
libtpu: 0.0.40
codegen_flags: <defaults>
</compile_context>

<pallas_src>
import jax
import jax.numpy as jnp
from jax.experimental import pallas as pl
from jax.experimental.pallas import tpu as pltpu


def _pcnn_pool_kernel(x_ref, w_ref, b_ref, m_ref, o_ref):
    # x_ref: (Bb, 1, H_pad, W)   raw input block (channel dim kept, size 1)
    # w_ref: (KH, W, Cp)         conv weight, channel-padded, pre-transposed for x @ w
    # b_ref: (1, Cp)             conv bias (f32, channel-padded)
    # m_ref: (A, Bb, Lp_pad, 1)  piecewise mask; Lp on sublanes, -1e30 in padded rows
    # o_ref: (Bb, A, Cp)         pooled output block
    A, Bb, Lp, _ = m_ref.shape
    KH, W, Cp = w_ref.shape

    # Full-width conv == KH shifted-slice MXU matmuls, f32 accumulation
    # (in-kernel im2col; x is only resident once in VMEM).
    def shifted_matmul(k):
        xk = x_ref[:, 0, k:k + Lp, :].reshape(Bb * Lp, W)   # free view: Lp % 8 == 0
        return jnp.dot(xk, w_ref[k], preferred_element_type=jnp.float32)

    scores = shifted_matmul(0)
    for k in range(1, KH):
        scores = scores + shifted_matmul(k)
    scores = scores.reshape(Bb, Lp, Cp)                      # free view (Lp % 8 == 0)

    # Piecewise max-pool: static loop over the (few) segments; the (A, Lp, Cp)
    # broadcast temporary is never materialized.  The mask add is a pure
    # lane-broadcast (mask last dim == 1, Lp already on sublanes).
    pooled = [jnp.max(scores + m_ref[a], axis=1, keepdims=True) for a in range(A)]
    out = jnp.concatenate(pooled, axis=1)                    # (Bb, A, Cp)

    # Bias added once, after the max: max_l(x + b) = max_l(x) + b.
    o_ref[...] = (out + b_ref[...][None, :, :]).astype(o_ref.dtype)


def cnn_with_pool(x, mask, weight, bias, *, compute_dtype=jnp.float32,
                  batch_block=None):
    """PCNN forward: Conv2d(1, C, (KH, W)) -> squeeze(3) -> piecewise max-pool.

    x: (B, 1, H, W); mask: (A, B, Lm) with Lm >= H-KH+1; weight: (C, 1, KH, W);
    bias: (C,).  Returns (B, A, C) float32 == pcnn_out of the PyTorch module.
    """
    B, Cin, H, W = x.shape
    assert Cin == 1, "Conv2d has a single input channel"
    C, _, KH, KW = weight.shape
    assert KW == W, "conv kernel width must equal input width (so squeeze(3) is valid)"
    Lp = H - KH + 1
    A, Bm, Lm = mask.shape
    assert Bm == B and Lm >= Lp

    SUB, LANE = 8, 128
    Lp_pad = -(-Lp // SUB) * SUB          # sublane-aligned pooled length
    Cp = -(-C // LANE) * LANE             # lane-dense channel dim
    H_pad = Lp_pad + KH - 1               # rows needed by the shifted slices

    # --- wrapper-side layout plumbing (small tensors only; x stays raw) ---
    x_in = x if H_pad == H else jnp.pad(x, ((0, 0), (0, 0), (0, H_pad - H), (0, 0)))
    if x_in.dtype != compute_dtype:
        x_in = x_in.astype(compute_dtype)                 # bf16 path: halves HBM bytes of x

    w = jnp.transpose(weight[:, 0, :, :], (1, 2, 0))      # (KH, W, C)
    if Cp != C:
        w = jnp.pad(w, ((0, 0), (0, 0), (0, Cp - C)))
    w = w.astype(compute_dtype)

    b2d = bias.astype(jnp.float32).reshape(1, C)
    if Cp != C:
        b2d = jnp.pad(b2d, ((0, 0), (0, Cp - C)))

    NEG = -1e30                                           # padded rows never win the max
    m = mask[:, :, :Lp].astype(jnp.float32)
    if Lp_pad != Lp:
        m = jnp.pad(m, ((0, 0), (0, 0), (0, Lp_pad - Lp)), constant_values=NEG)
    m = m[..., None]                                      # (A, B, Lp_pad, 1): Lp on sublanes

    # --- block / grid selection ---
    if batch_block is None:
        # single block for tiny problems; tile the batch once the folded MXU M dim
        # grows (v7x: uses both TensorCores and bounds per-block VMEM).
        batch_block = B if B * Lp_pad <= 512 else max(1, 512 // Lp_pad)
    Bb = max(1, min(batch_block, B))
    num_blocks = -(-B // Bb)   # ragged tail is handled by Pallas block clamping

    itm = jnp.dtype(compute_dtype).itemsize
    flops = 2 * KH * B * Lp_pad * W * Cp + 3 * A * B * Lp_pad * Cp
    bytes_accessed = int(x_in.size * itm + w.size * itm + b2d.size * 4
                         + m.size * 4 + B * A * Cp * 4)
    cost = pl.CostEstimate(flops=flops, transcendentals=0,
                           bytes_accessed=bytes_accessed)

    blk_bytes = (Bb * H_pad * W * itm + w.size * itm + b2d.size * 4
                 + A * Bb * Lp_pad * 4 + Bb * A * Cp * 4)
    tmp_bytes = 4 * Bb * Lp_pad * Cp * 4
    vmem_limit = int(min(64 << 20, max(16 << 20, 2 * blk_bytes + tmp_bytes + (1 << 20))))

    out_shape = jax.ShapeDtypeStruct((B, A, Cp), jnp.float32)

    if num_blocks == 1:
        # Grid-less call: whole arrays resident in VMEM, no pipeline machinery.
        out_p = pl.pallas_call(
            _pcnn_pool_kernel,
            out_shape=out_shape,
            in_specs=[pl.BlockSpec(memory_space=pltpu.MemorySpace.VMEM)] * 4,
            out_specs=pl.BlockSpec(memory_space=pltpu.MemorySpace.VMEM),
            compiler_params=pltpu.CompilerParams(vmem_limit_bytes=vmem_limit),
            cost_estimate=cost,
        )(x_in, w, b2d, m)
    else:
        # Batch-tiled grid; steps are independent -> "parallel" (megacore / v7x 2 TCs).
        out_p = pl.pallas_call(
            _pcnn_pool_kernel,
            out_shape=out_shape,
            grid=(num_blocks,),
            in_specs=[
                pl.BlockSpec((Bb, 1, H_pad, W), lambda i: (i, 0, 0, 0)),
                pl.BlockSpec((KH, W, Cp), lambda i: (0, 0, 0)),
                pl.BlockSpec((1, Cp), lambda i: (0, 0)),
                pl.BlockSpec((A, Bb, Lp_pad, 1), lambda i: (0, i, 0, 0)),
            ],
            out_specs=pl.BlockSpec((Bb, A, Cp), lambda i: (i, 0, 0)),
            compiler_params=pltpu.CompilerParams(
                dimension_semantics=("parallel",), vmem_limit_bytes=vmem_limit),
            cost_estimate=cost,
        )(x_in, w, b2d, m)

    return out_p if Cp == C else out_p[:, :, :C]


if __name__ == "__main__":
    key = jax.random.PRNGKey(0)
    # Small shapes consistent with the module: batch=2, seq H=10, emb width W=16,
    # cnn_layers=8, kernel_size=(3, 16), 3 piecewise segments.
    B, H, W = 2, 10, 16
    cnn_layers = 8
    KH, KW = 3, W
    A = 3
    Lm = H  # mask length >= conv output length

    k1, k2, k3 = jax.random.split(key, 3)
    x = jax.random.normal(k1, (B, 1, H, W), dtype=jnp.float32)
    mask = jax.random.normal(k2, (A, B, Lm), dtype=jnp.float32)

    # Deterministic Conv2d params; bias set to 0.0 exactly as in the module __init__.
    fan_in = 1 * KH * KW
    bound = 1.0 / (fan_in ** 0.5)
    weight = jax.random.uniform(k3, (cnn_layers, 1, KH, KW),
                                minval=-bound, maxval=bound, dtype=jnp.float32)
    bias = jnp.zeros((cnn_layers,), dtype=jnp.float32)

    # Pure-JAX reference of the full forward semantics.
    Lp = H - KH + 1
    cnn_out = jax.lax.conv_general_dilated(
        x, weight, (1, 1), "VALID",
        dimension_numbers=("NCHW", "OIHW", "NCHW"))[:, :, :, 0] + bias[None, :, None]
    m_t = jnp.transpose(mask[:, :, :Lp], (1, 0, 2))                      # (B, A, Lp)
    ref = jnp.max(cnn_out[:, None, :, :] + m_t[:, :, None, :], axis=3)   # (B, A, C)

    # 1) default path: grid-less, f32, strict check.
    run_f32 = jax.jit(lambda xx, mm, ww, bb: cnn_with_pool(xx, mm, ww, bb))
    out = jax.block_until_ready(run_f32(x, mask, weight, bias))
    assert out.shape == (B, A, cnn_layers)
    assert jnp.allclose(out, ref, atol=1e-4, rtol=1e-4)

    # 2) batch-tiled "parallel" grid path (what large B*Lp / v7x would use).
    run_grid = jax.jit(
        lambda xx, mm, ww, bb: cnn_with_pool(xx, mm, ww, bb, batch_block=1))
    out_g = jax.block_until_ready(run_grid(x, mask, weight, bias))
    assert jnp.allclose(out_g, ref, atol=1e-4, rtol=1e-4)

    # 3) bf16 MXU fast path (f32 accumulation + f32 pooling epilogue).
    run_bf16 = jax.jit(
        lambda xx, mm, ww, bb: cnn_with_pool(xx, mm, ww, bb,
                                             compute_dtype=jnp.bfloat16))
    out_bf16 = jax.block_until_ready(run_bf16(x, mask, weight, bias))
    assert out_bf16.shape == (B, A, cnn_layers)
    assert jnp.allclose(out_bf16, ref, atol=5e-2, rtol=5e-2)

    print("KERNEL_OK")
</pallas_src>

<mosaic_0001>
module attributes {stable_mosaic.version = 11 : i64} {
  func.func @_pcnn_pool_kernel(%arg0: memref<2x1x10x16xf32, #tpu.memory_space<vmem>>, %arg1: memref<3x16x128xf32, #tpu.memory_space<vmem>>, %arg2: memref<1x128xf32, #tpu.memory_space<vmem>>, %arg3: memref<3x2x8x1xf32, #tpu.memory_space<vmem>>, %arg4: memref<2x3x128xf32, #tpu.memory_space<vmem>>) attributes {dimension_semantics = [], scalar_prefetch = 0 : i64, scratch_operands = 0 : i64, tpu.core_type = #tpu.core_type<tc>} {
    %c0 = arith.constant 0 : index
    %c0_0 = arith.constant 0 : index
    %c0_1 = arith.constant 0 : index
    %c0_2 = arith.constant 0 : index
    %0 = vector.load %arg0[%c0, %c0_0, %c0_1, %c0_2] : memref<2x1x10x16xf32, #tpu.memory_space<vmem>>, vector<2x1x8x16xf32>
    %1 = vector.shape_cast %0 : vector<2x1x8x16xf32> to vector<2x8x16xf32>
    %2 = vector.shape_cast %1 : vector<2x8x16xf32> to vector<16x16xf32>
    %c0_3 = arith.constant 0 : index
    %c0_4 = arith.constant 0 : index
    %c0_5 = arith.constant 0 : index
    %3 = vector.load %arg1[%c0_3, %c0_4, %c0_5] : memref<3x16x128xf32, #tpu.memory_space<vmem>>, vector<1x16x128xf32>
    %4 = vector.shape_cast %3 : vector<1x16x128xf32> to vector<16x128xf32>
    %cst = arith.constant dense<0.000000e+00> : vector<16x128xf32>
    %5 = tpu.matmul %2, %4, %cst {dimension_numbers = #tpu.dot_dimension_numbers<[1], [0], [0], [1], [0, 0, 1, 1], [], []>} : vector<16x16xf32>, vector<16x128xf32>, vector<16x128xf32> -> vector<16x128xf32>
    %c0_6 = arith.constant 0 : index
    %c0_7 = arith.constant 0 : index
    %c1 = arith.constant 1 : index
    %c0_8 = arith.constant 0 : index
    %6 = vector.load %arg0[%c0_6, %c0_7, %c1, %c0_8] : memref<2x1x10x16xf32, #tpu.memory_space<vmem>>, vector<2x1x8x16xf32>
    %7 = vector.shape_cast %6 : vector<2x1x8x16xf32> to vector<2x8x16xf32>
    %8 = vector.shape_cast %7 : vector<2x8x16xf32> to vector<16x16xf32>
    %c1_9 = arith.constant 1 : index
    %c0_10 = arith.constant 0 : index
    %c0_11 = arith.constant 0 : index
    %9 = vector.load %arg1[%c1_9, %c0_10, %c0_11] : memref<3x16x128xf32, #tpu.memory_space<vmem>>, vector<1x16x128xf32>
    %10 = vector.shape_cast %9 : vector<1x16x128xf32> to vector<16x128xf32>
    %cst_12 = arith.constant dense<0.000000e+00> : vector<16x128xf32>
    %11 = tpu.matmul %8, %10, %cst_12 {dimension_numbers = #tpu.dot_dimension_numbers<[1], [0], [0], [1], [0, 0, 1, 1], [], []>} : vector<16x16xf32>, vector<16x128xf32>, vector<16x128xf32> -> vector<16x128xf32>
    %12 = arith.addf %5, %11 : vector<16x128xf32>
    %c0_13 = arith.constant 0 : index
    %c0_14 = arith.constant 0 : index
    %c2 = arith.constant 2 : index
    %c0_15 = arith.constant 0 : index
    %13 = vector.load %arg0[%c0_13, %c0_14, %c2, %c0_15] : memref<2x1x10x16xf32, #tpu.memory_space<vmem>>, vector<2x1x8x16xf32>
    %14 = vector.shape_cast %13 : vector<2x1x8x16xf32> to vector<2x8x16xf32>
    %15 = vector.shape_cast %14 : vector<2x8x16xf32> to vector<16x16xf32>
    %c2_16 = arith.constant 2 : index
    %c0_17 = arith.constant 0 : index
    %c0_18 = arith.constant 0 : index
    %16 = vector.load %arg1[%c2_16, %c0_17, %c0_18] : memref<3x16x128xf32, #tpu.memory_space<vmem>>, vector<1x16x128xf32>
    %17 = vector.shape_cast %16 : vector<1x16x128xf32> to vector<16x128xf32>
    %cst_19 = arith.constant dense<0.000000e+00> : vector<16x128xf32>
    %18 = tpu.matmul %15, %17, %cst_19 {dimension_numbers = #tpu.dot_dimension_numbers<[1], [0], [0], [1], [0, 0, 1, 1], [], []>} : vector<16x16xf32>, vector<16x128xf32>, vector<16x128xf32> -> vector<16x128xf32>
    %19 = arith.addf %12, %18 : vector<16x128xf32>
    %20 = vector.shape_cast %19 : vector<16x128xf32> to vector<2x8x128xf32>
    %c0_20 = arith.constant 0 : index
    %c0_21 = arith.constant 0 : index
    %c0_22 = arith.constant 0 : index
    %c0_23 = arith.constant 0 : index
    %21 = vector.load %arg3[%c0_20, %c0_21, %c0_22, %c0_23] : memref<3x2x8x1xf32, #tpu.memory_space<vmem>>, vector<1x2x8x1xf32>
    %22 = vector.shape_cast %21 : vector<1x2x8x1xf32> to vector<2x8x1xf32>
    %23 = vector.broadcast %22 : vector<2x8x1xf32> to vector<2x8x128xf32>
    %24 = arith.addf %20, %23 : vector<2x8x128xf32>
    %cst_24 = arith.constant dense<0xFF800000> : vector<2x128xf32>
    %25 = vector.multi_reduction <maximumf>, %24, %cst_24 [1] : vector<2x8x128xf32> to vector<2x128xf32>
    %26 = vector.shape_cast %25 : vector<2x128xf32> to vector<2x1x128xf32>
    %c1_25 = arith.constant 1 : index
    %c0_26 = arith.constant 0 : index
    %c0_27 = arith.constant 0 : index
    %c0_28 = arith.constant 0 : index
    %27 = vector.load %arg3[%c1_25, %c0_26, %c0_27, %c0_28] : memref<3x2x8x1xf32, #tpu.memory_space<vmem>>, vector<1x2x8x1xf32>
    %28 = vector.shape_cast %27 : vector<1x2x8x1xf32> to vector<2x8x1xf32>
    %29 = vector.broadcast %28 : vector<2x8x1xf32> to vector<2x8x128xf32>
    %30 = arith.addf %20, %29 : vector<2x8x128xf32>
    %cst_29 = arith.constant dense<0xFF800000> : vector<2x128xf32>
    %31 = vector.multi_reduction <maximumf>, %30, %cst_29 [1] : vector<2x8x128xf32> to vector<2x128xf32>
    %32 = vector.shape_cast %31 : vector<2x128xf32> to vector<2x1x128xf32>
    %c2_30 = arith.constant 2 : index
    %c0_31 = arith.constant 0 : index
    %c0_32 = arith.constant 0 : index
    %c0_33 = arith.constant 0 : index
    %33 = vector.load %arg3[%c2_30, %c0_31, %c0_32, %c0_33] : memref<3x2x8x1xf32, #tpu.memory_space<vmem>>, vector<1x2x8x1xf32>
    %34 = vector.shape_cast %33 : vector<1x2x8x1xf32> to vector<2x8x1xf32>
    %35 = vector.broadcast %34 : vector<2x8x1xf32> to vector<2x8x128xf32>
    %36 = arith.addf %20, %35 : vector<2x8x128xf32>
    %cst_34 = arith.constant dense<0xFF800000> : vector<2x128xf32>
    %37 = vector.multi_reduction <maximumf>, %36, %cst_34 [1] : vector<2x8x128xf32> to vector<2x128xf32>
    %38 = vector.shape_cast %37 : vector<2x128xf32> to vector<2x1x128xf32>
    %39 = tpu.concatenate %26, %32, %38 in 1 : vector<2x1x128xf32>, vector<2x1x128xf32>, vector<2x1x128xf32> -> vector<2x3x128xf32>
    %c0_35 = arith.constant 0 : index
    %c0_36 = arith.constant 0 : index
    %40 = vector.load %arg2[%c0_35, %c0_36] : memref<1x128xf32, #tpu.memory_space<vmem>>, vector<1x128xf32>
    %41 = vector.shape_cast %40 : vector<1x128xf32> to vector<1x1x128xf32>
    %42 = vector.broadcast %41 : vector<1x1x128xf32> to vector<2x3x128xf32>
    %43 = arith.addf %39, %42 : vector<2x3x128xf32>
    %c0_37 = arith.constant 0 : index
    %c0_38 = arith.constant 0 : index
    %c0_39 = arith.constant 0 : index
    %44 = vector.load %arg4[%c0_37, %c0_38, %c0_39] : memref<2x3x128xf32, #tpu.memory_space<vmem>>, vector<2x3x128xf32>
    tpu.vector_store %arg4[%c0_37, %c0_38, %c0_39], %43 {strides = array<i32>} : memref<2x3x128xf32, #tpu.memory_space<vmem>>, vector<2x3x128xf32>,
    return
  }
}

</mosaic_0001>

<llo_original>
// kernel: _lambda_.1
$region0: #{_lambda_.1}
  #allocation0 [shape = 'u32[]', space=smem, size = 0x4, offset = 0x4, fixed_abs, tag = 'smem constant byte address 0x4 - core index']
  #allocation1 [shape = 'u32[144,128]{1,0:T(1,128)}', space=vmem, size = 0x12000, scoped, tag = 'internal scratch']
  %s0 = inlined_call_operand.vmem [shape: f32[2,1,10,16], index: 0, kind: input, shape index: {}]
  %s1 = inlined_call_operand.vmem [shape: f32[3,16,128], index: 1, kind: input, shape index: {}]
  %s2 = inlined_call_operand.vmem [shape: f32[1,128], index: 2, kind: input, shape index: {}]
  %s3 = inlined_call_operand.vmem [shape: f32[3,2,8,1], index: 3, kind: input, shape index: {}]
  %s4 = inlined_call_operand.vmem [shape: f32[2,3,128], index: 4, kind: output, shape index: {}]
  %s5 = sld [smem:[#allocation0]]
  $region26: #{_lambda_.1} parent=0
    _
  %s7 = ssub.s32 1, %s5
  %s8 = scalar_select 0, %s7, %s5
  // Predicated region
  $region2: #{_lambda_.1} parent=0 // pred_check
    _
  $region3: #{_lambda_.1} parent=0 // pred_check_branch
    %10 = sbr.rel (0) target = $region5
  $region4: #{_lambda_.1} parent=0 // pred_region
    _
  $region5: #{_lambda_.1} parent=0 // pred_fallthru
    _
  // Predicated region
  $region6: #{_lambda_.1} parent=0 // pred_check
    _
  $region7: #{_lambda_.1} parent=0 // pred_check_branch
    %12 = sbr.rel (0) target = $region9
  $region8: #{_lambda_.1} parent=0 // pred_region
    _
  $region9: #{_lambda_.1} parent=0 // pred_fallthru
    _
  // Predicated region
  $region10: #{_lambda_.1} parent=0 // pred_check
    _
  $region11: #{_lambda_.1} parent=0 // pred_check_branch
    %14 = sbr.rel (0) target = $region13
  $region12: #{_lambda_.1} parent=0 // pred_region
    _
  $region13: #{_lambda_.1} parent=0 // pred_fallthru
    _
  // Predicated region
  $region14: #{_lambda_.1} parent=0 // pred_check
    _
  $region15: #{_lambda_.1} parent=0 // pred_check_branch
    %16 = sbr.rel (0) target = $region17
  $region16: #{_lambda_.1} parent=0 // pred_region
    _
  $region17: #{_lambda_.1} parent=0 // pred_fallthru
    _
  %v17 = vld [vmem:[%s0] sm:$0xff]
  %v18 = vld [vmem:[%s0 + $0x10] sm:$0xff]
  %v19 = vld [vmem:[%s1] sm:$0xff]
  %v20 = vld [vmem:[%s1 + $0x8] sm:$0xff]
  %v21 = vld [vmem:[%s0 + $0x1] sm:$0xff]
  %v22 = vld [vmem:[%s0 + $0x11] sm:$0xff]
  %s23 = scalar_lea.vmem %s1, 16
  %v24 = vld [vmem:[%s23] sm:$0xff]
  %v25 = vld [vmem:[%s23 + $0x8] sm:$0xff]
  %vm26 = vcmask 130048
  %v28 = vsel %vm26, %v21, 0
  %v31 = vsel %vm26, %v22, 0
  %33 = vmatprep.subr.mxu0 0.0
  %34 = vmatpush1.msra.mxu0 %v24
  %35 = vmatprep.subr.mxu0 0.0
  %36 = vmatpush1.msra.mxu0 %v25
  %37 = vmatprep.subr.mxu0 0.0
  %38 = vmatpush1.msra.mxu0 0.0
  %39 = vmatprep.subr.mxu0 0.0
  %40 = vmatpush1.msra.mxu0 0.0
  %41 = vmatprep.subr.mxu0 0.0
  %42 = vmatpush1.msra.mxu0 0.0
  %43 = vmatprep.subr.mxu0 0.0
  %44 = vmatpush1.msra.mxu0 0.0
  %45 = vmatprep.subr.mxu0 0.0
  %46 = vmatpush1.msra.mxu0 0.0
  %47 = vmatprep.subr.mxu0 0.0
  %48 = vmatpush1.msra.mxu0 0.0
  %49 = vmatprep.subr.mxu0 0.0
  %50 = vmatpush1.msra.mxu0 0.0
  %51 = vmatprep.subr.mxu0 0.0
  %52 = vmatpush1.msra.mxu0 0.0
  %53 = vmatprep.subr.mxu0 0.0
  %54 = vmatpush1.msra.mxu0 0.0
  %55 = vmatprep.subr.mxu0 0.0
  %56 = vmatpush1.msra.mxu0 0.0
  %57 = vmatprep.subr.mxu0 0.0
  %58 = vmatpush1.msra.mxu0 0.0
  %59 = vmatprep.subr.mxu0 0.0
  %60 = vmatpush1.msra.mxu0 0.0
  %61 = vmatprep.subr.mxu0 0.0
  %62 = vmatpush1.msra.mxu0 0.0
  %63 = vmatprep.subr.mxu0 0.0
  %64 = vmatpush1.msra.mxu0 0.0
  %65 = vmatprep.subr.mxu0 0.0
  %66 = vmatpush1.msra.mxu0 0.0
  %67 = vmatprep.subr.mxu0 0.0
  %68 = vmatpush1.msra.mxu0 0.0
  %69 = vmatprep.subr.mxu0 0.0
  %70 = vmatpush1.msra.mxu0 0.0
  %71 = vmatprep.subr.mxu0 0.0
  %72 = vmatpush1.msra.mxu0 0.0
  %73 = vmatprep.subr.mxu0 0.0
  %74 = vmatpush1.msra.mxu0 0.0
  %75 = vmatprep.subr.mxu0 0.0
  %76 = vmatpush1.msra.mxu0 0.0
  %77 = vmatprep.subr.mxu0 0.0
  %78 = vmatpush1.msra.mxu0 0.0
  %79 = vmatprep.subr.mxu0 0.0
  %80 = vmatpush1.msra.mxu0 0.0
  %81 = vmatprep.subr.mxu0 0.0
  %82 = vmatpush1.msra.mxu0 0.0
  %83 = vmatprep.subr.mxu0 0.0
  %84 = vmatpush1.msra.mxu0 0.0
  %85 = vmatprep.subr.mxu0 0.0
  %86 = vmatpush1.msra.mxu0 0.0
  %87 = vmatprep.subr.mxu0 0.0
  %88 = vmatpush1.msra.mxu0 0.0
  %89 = vmatprep.subr.mxu0 0.0
  %90 = vmatpush1.msra.mxu0 0.0
  %91 = vmatprep.subr.mxu0 0.0
  %92 = vmatpush1.msra.mxu0 0.0
  %93 = vmatprep.subr.mxu0 0.0
  %94 = vmatpush1.msra.mxu0 0.0
  %95 = vmatprep.subr.mxu0 0.0
  %96 = vmatpush1.msra.mxu0 0.0
  %97 = vmatprep.mubr.f32.mxu0 0.0
  %98 = vmatmul.mubr.f32.gmra.mrb[0].mxu0 %v28
  %v99 = vpop.f32.mrb[0].mxu0
  %v100 = vadd.f32 0.0, %v99
  %v101 = vpop.f32.mrb[0].mxu0
  %102 = vmatprep.mubr.f32.mxu0 0.0
  %103 = vmatmul.mubr.f32.gmra.mrb[0].mxu0 %v31
  %v104 = vpop.f32.mrb[0].mxu0
  %v105 = vadd.f32 0.0, %v104
  %v106 = vpop.f32.mrb[0].mxu0
  %107 = vdwg.mxu0
  %v109 = vsel %vm26, %v17, 0
  %v112 = vsel %vm26, %v18, 0
  %114 = vmatprep.subr.mxu0 0.0
  %115 = vmatpush1.msra.mxu0 %v19
  %116 = vmatprep.subr.mxu0 0.0
  %117 = vmatpush1.msra.mxu0 %v20
  %118 = vmatprep.subr.mxu0 0.0
  %119 = vmatpush1.msra.mxu0 0.0
  %120 = vmatprep.subr.mxu0 0.0
  %121 = vmatpush1.msra.mxu0 0.0
  %122 = vmatprep.subr.mxu0 0.0
  %123 = vmatpush1.msra.mxu0 0.0
  %124 = vmatprep.subr.mxu0 0.0
  %125 = vmatpush1.msra.mxu0 0.0
  %126 = vmatprep.subr.mxu0 0.0
  %127 = vmatpush1.msra.mxu0 0.0
  %128 = vmatprep.subr.mxu0 0.0
  %129 = vmatpush1.msra.mxu0 0.0
  %130 = vmatprep.subr.mxu0 0.0
  %131 = vmatpush1.msra.mxu0 0.0
  %132 = vmatprep.subr.mxu0 0.0
  %133 = vmatpush1.msra.mxu0 0.0
  %134 = vmatprep.subr.mxu0 0.0
  %135 = vmatpush1.msra.mxu0 0.0
  %136 = vmatprep.subr.mxu0 0.0
  %137 = vmatpush1.msra.mxu0 0.0
  %138 = vmatprep.subr.mxu0 0.0
  %139 = vmatpush1.msra.mxu0 0.0
  %140 = vmatprep.subr.mxu0 0.0
  %141 = vmatpush1.msra.mxu0 0.0
  %142 = vmatprep.subr.mxu0 0.0
  %143 = vmatpush1.msra.mxu0 0.0
  %144 = vmatprep.subr.mxu0 0.0
  %145 = vmatpush1.msra.mxu0 0.0
  %146 = vmatprep.subr.mxu0 0.0
  %147 = vmatpush1.msra.mxu0 0.0
  %148 = vmatprep.subr.mxu0 0.0
  %149 = vmatpush1.msra.mxu0 0.0
  %150 = vmatprep.subr.mxu0 0.0
  %151 = vmatpush1.msra.mxu0 0.0
  %152 = vmatprep.subr.mxu0 0.0
  %153 = vmatpush1.msra.mxu0 0.0
  %154 = vmatprep.subr.mxu0 0.0
  %155 = vmatpush1.msra.mxu0 0.0
  %156 = vmatprep.subr.mxu0 0.0
  %157 = vmatpush1.msra.mxu0 0.0
  %158 = vmatprep.subr.mxu0 0.0
  %159 = vmatpush1.msra.mxu0 0.0
  %160 = vmatprep.subr.mxu0 0.0
  %161 = vmatpush1.msra.mxu0 0.0
  %162 = vmatprep.subr.mxu0 0.0
  %163 = vmatpush1.msra.mxu0 0.0
  %164 = vmatprep.subr.mxu0 0.0
  %165 = vmatpush1.msra.mxu0 0.0
  %166 = vmatprep.subr.mxu0 0.0
  %167 = vmatpush1.msra.mxu0 0.0
  %168 = vmatprep.subr.mxu0 0.0
  %169 = vmatpush1.msra.mxu0 0.0
  %170 = vmatprep.subr.mxu0 0.0
  %171 = vmatpush1.msra.mxu0 0.0
  %172 = vmatprep.subr.mxu0 0.0
  %173 = vmatpush1.msra.mxu0 0.0
  %174 = vmatprep.subr.mxu0 0.0
  %175 = vmatpush1.msra.mxu0 0.0
  %176 = vmatprep.subr.mxu0 0.0
  %177 = vmatpush1.msra.mxu0 0.0
  %178 = vmatprep.mubr.f32.mxu0 0.0
  %179 = vmatmul.mubr.f32.gmra.mrb[0].mxu0 %v109
  %v180 = vpop.f32.mrb[0].mxu0
  %v181 = vadd.f32 %v100, %v180
  %v182 = vpop.f32.mrb[0].mxu0
  %183 = vmatprep.mubr.f32.mxu0 0.0
  %184 = vmatmul.mubr.f32.gmra.mrb[0].mxu0 %v112
  %v185 = vpop.f32.mrb[0].mxu0
  %v186 = vadd.f32 %v105, %v185
  %v187 = vpop.f32.mrb[0].mxu0
  %188 = vdwg.mxu0
  %v189 = vld [vmem:[%s0 + $0x2] sm:$0xff]
  %v190 = vld [vmem:[%s0 + $0x12] sm:$0xff]
  %s191 = scalar_lea.vmem %s1, 32
  %v192 = vld [vmem:[%s191] sm:$0xff]
  %v193 = vld [vmem:[%s191 + $0x8] sm:$0xff]
  %v195 = vsel %vm26, %v189, 0
  %v198 = vsel %vm26, %v190, 0
  %200 = vmatprep.subr.mxu0 0.0
  %201 = vmatpush1.msra.mxu0 %v192
  %202 = vmatprep.subr.mxu0 0.0
  %203 = vmatpush1.msra.mxu0 %v193
  %204 = vmatprep.subr.mxu0 0.0
  %205 = vmatpush1.msra.mxu0 0.0
  %206 = vmatprep.subr.mxu0 0.0
  %207 = vmatpush1.msra.mxu0 0.0
  %208 = vmatprep.subr.mxu0 0.0
  %209 = vmatpush1.msra.mxu0 0.0
  %210 = vmatprep.subr.mxu0 0.0
  %211 = vmatpush1.msra.mxu0 0.0
  %212 = vmatprep.subr.mxu0 0.0
  %213 = vmatpush1.msra.mxu0 0.0
  %214 = vmatprep.subr.mxu0 0.0
  %215 = vmatpush1.msra.mxu0 0.0
  %216 = vmatprep.subr.mxu0 0.0
  %217 = vmatpush1.msra.mxu0 0.0
  %218 = vmatprep.subr.mxu0 0.0
  %219 = vmatpush1.msra.mxu0 0.0
  %220 = vmatprep.subr.mxu0 0.0
  %221 = vmatpush1.msra.mxu0 0.0
  %222 = vmatprep.subr.mxu0 0.0
  %223 = vmatpush1.msra.mxu0 0.0
  %224 = vmatprep.subr.mxu0 0.0
  %225 = vmatpush1.msra.mxu0 0.0
  %226 = vmatprep.subr.mxu0 0.0
  %227 = vmatpush1.msra.mxu0 0.0
  %228 = vmatprep.subr.mxu0 0.0
  %229 = vmatpush1.msra.mxu0 0.0
  %230 = vmatprep.subr.mxu0 0.0
  %231 = vmatpush1.msra.mxu0 0.0
  %232 = vmatprep.subr.mxu0 0.0
  %233 = vmatpush1.msra.mxu0 0.0
  %234 = vmatprep.subr.mxu0 0.0
  %235 = vmatpush1.msra.mxu0 0.0
  %236 = vmatprep.subr.mxu0 0.0
  %237 = vmatpush1.msra.mxu0 0.0
  %238 = vmatprep.subr.mxu0 0.0
  %239 = vmatpush1.msra.mxu0 0.0
  %240 = vmatprep.subr.mxu0 0.0
  %241 = vmatpush1.msra.mxu0 0.0
  %242 = vmatprep.subr.mxu0 0.0
  %243 = vmatpush1.msra.mxu0 0.0
  %244 = vmatprep.subr.mxu0 0.0
  %245 = vmatpush1.msra.mxu0 0.0
  %246 = vmatprep.subr.mxu0 0.0
  %247 = vmatpush1.msra.mxu0 0.0
  %248 = vmatprep.subr.mxu0 0.0
  %249 = vmatpush1.msra.mxu0 0.0
  %250 = vmatprep.subr.mxu0 0.0
  %251 = vmatpush1.msra.mxu0 0.0
  %252 = vmatprep.subr.mxu0 0.0
  %253 = vmatpush1.msra.mxu0 0.0
  %254 = vmatprep.subr.mxu0 0.0
  %255 = vmatpush1.msra.mxu0 0.0
  %256 = vmatprep.subr.mxu0 0.0
  %257 = vmatpush1.msra.mxu0 0.0
  %258 = vmatprep.subr.mxu0 0.0
  %259 = vmatpush1.msra.mxu0 0.0
  %260 = vmatprep.subr.mxu0 0.0
  %261 = vmatpush1.msra.mxu0 0.0
  %262 = vmatprep.subr.mxu0 0.0
  %263 = vmatpush1.msra.mxu0 0.0
  %264 = vmatprep.mubr.f32.mxu0 0.0
  %265 = vmatmul.mubr.f32.gmra.mrb[0].mxu0 %v195
  %v266 = vpop.f32.mrb[0].mxu0
  %v267 = vadd.f32 0.0, %v266
  %v268 = vpop.f32.mrb[0].mxu0
  %269 = vmatprep.mubr.f32.mxu0 0.0
  %270 = vmatmul.mubr.f32.gmra.mrb[0].mxu0 %v198
  %v271 = vpop.f32.mrb[0].mxu0
  %v272 = vadd.f32 0.0, %v271
  %v273 = vpop.f32.mrb[0].mxu0
  %274 = vdwg.mxu0
  %v275 = vadd.f32 %v181, %v267
  %v276 = vadd.f32 %v186, %v272
  %v277 = vld [vmem:[%s3] sm:$0xff]
  %v278 = vld [vmem:[%s3 + $0x8] sm:$0xff]
  %280 = vset.pattern.permute.xlu0 0
  %281 = vperm.xlu0 %280, %v277
  %v282 = vpop.permute.xlu0 %281
  %285 = vset.pattern.permute.xlu0 0
  %286 = vperm.xlu0 %285, %v278
  %v287 = vpop.permute.xlu0 %286
  %v289 = vadd.f32 %v275, %v282
  %v290 = vadd.f32 %v276, %v287
  %v291 = vrot.slane %v289, 4
  %v292 = vmax.f32 %v289, %v291
  %v293 = vrot.slane %v292, 2
  %v294 = vmax.f32 %v292, %v293
  %v295 = vrot.slane %v294, 1
  %v296 = vmax.f32 %v294, %v295
  %v297 = vrot.slane %v290, 4
  %v298 = vmax.f32 %v290, %v297
  %v299 = vrot.slane %v298, 2
  %v300 = vmax.f32 %v298, %v299
  %v301 = vrot.slane %v300, 1
  %v302 = vmax.f32 %v300, %v301
  %s303 = scalar_lea.vmem %s3, 16
  %v304 = vld [vmem:[%s303] sm:$0xff]
  %v305 = vld [vmem:[%s303 + $0x8] sm:$0xff]
  %307 = vset.pattern.permute.xlu0 0
  %308 = vperm.xlu0 %307, %v304
  %v309 = vpop.permute.xlu0 %308
  %312 = vset.pattern.permute.xlu0 0
  %313 = vperm.xlu0 %312, %v305
  %v314 = vpop.permute.xlu0 %313
  %v316 = vadd.f32 %v275, %v309
  %v317 = vadd.f32 %v276, %v314
  %v318 = vrot.slane %v316, 4
  %v319 = vmax.f32 %v316, %v318
  %v320 = vrot.slane %v319, 2
  %v321 = vmax.f32 %v319, %v320
  %v322 = vrot.slane %v321, 1
  %v323 = vmax.f32 %v321, %v322
  %v324 = vrot.slane %v317, 4
  %v325 = vmax.f32 %v317, %v324
  %v326 = vrot.slane %v325, 2
  %v327 = vmax.f32 %v325, %v326
  %v328 = vrot.slane %v327, 1
  %v329 = vmax.f32 %v327, %v328
  %s330 = scalar_lea.vmem %s3, 32
  %v331 = vld [vmem:[%s330] sm:$0xff]
  %v332 = vld [vmem:[%s330 + $0x8] sm:$0xff]
  %334 = vset.pattern.permute.xlu0 0
  %335 = vperm.xlu0 %334, %v331
  %v336 = vpop.permute.xlu0 %335
  %339 = vset.pattern.permute.xlu0 0
  %340 = vperm.xlu0 %339, %v332
  %v341 = vpop.permute.xlu0 %340
  %v343 = vadd.f32 %v275, %v336
  %v344 = vadd.f32 %v276, %v341
  %v345 = vrot.slane %v343, 4
  %v346 = vmax.f32 %v343, %v345
  %v347 = vrot.slane %v346, 2
  %v348 = vmax.f32 %v346, %v347
  %v349 = vrot.slane %v348, 1
  %v350 = vmax.f32 %v348, %v349
  %v351 = vrot.slane %v344, 4
  %v352 = vmax.f32 %v344, %v351
  %v353 = vrot.slane %v352, 2
  %v354 = vmax.f32 %v352, %v353
  %v355 = vrot.slane %v354, 1
  %v356 = vmax.f32 %v354, %v355
  %vm357 = vcmask 1040384
  %v358 = vsel %vm357, %v296, %v323
  %v359 = vsel %vm357, %v302, %v329
  %vm360 = vcmask 1041408
  %v361 = vsel %vm360, %v358, %v350
  %v362 = vsel %vm360, %v359, %v356
  %v363 = vld [vmem:[%s2] sm:$0x1]
  %v365 = vlaneseq
  %v366 = vshrl.u32 %v365, 7
  %v367 = vsub.s32 0, %v366
  %v368 = vrot.slane %v363, %v367
  %v370 = vadd.f32 %v361, %v368
  %v371 = vadd.f32 %v362, %v368
  %372 = vst [vmem:[%s4] sm:$0x7] %v370
  %373 = vst [vmem:[%s4 + $0x4] sm:$0x7] %v371
  // Predicated region
  $region18: #{_lambda_.1} parent=0 // pred_check
    _
  $region19: #{_lambda_.1} parent=0 // pred_check_branch
    %375 = sbr.rel (0) target = $region21
  $region20: #{_lambda_.1} parent=0 // pred_region
    _
  $region21: #{_lambda_.1} parent=0 // pred_fallthru
    _
  // Predicated region
  $region22: #{_lambda_.1} parent=0 // pred_check
    _
  $region23: #{_lambda_.1} parent=0 // pred_check_branch
    %377 = sbr.rel (0) target = $region25
  $region24: #{_lambda_.1} parent=0 // pred_region
    _
  $region25: #{_lambda_.1} parent=0 // pred_fallthru
    _

</llo_original>
